<compile_context>
chip_gen: v6e
topology: v6e:2x2x1
jax: 0.10.0
libtpu: 0.0.40
codegen_flags: <defaults>
</compile_context>

<pallas_src>
import functools

import jax
import jax.numpy as jnp
from jax.experimental import pallas as pl
from jax.experimental.pallas import tpu as pltpu

EPS = 1e-5  # nn.BatchNorm1d default eps


# ---------------------------------------------------------------------------------------
# Shared per-(batch, T-tile) conv body: dilated k=3 conv -> ReLU -> 1x1 conv.
# `pad_ref` is a (Ci, Tt + 2d) VMEM scratch: [halo | x] is staged contiguously once and
# the three dilated taps are static slices of it (no lane concats, no im2col slab).
# ---------------------------------------------------------------------------------------
def _conv_relu_1x1(halo, x, wtap_ref, bd_ref, w1_ref, b1_ref, pad_ref, d):
    tt = x.shape[-1]
    pad_ref[:, pl.ds(0, 2 * d)] = halo                 # [Ci, 2d]
    pad_ref[:, pl.ds(2 * d, tt)] = x                   # [Ci, Tt]
    h = jnp.dot(wtap_ref[0], pad_ref[:, pl.ds(0, tt)],
                preferred_element_type=jnp.float32)
    h = h + jnp.dot(wtap_ref[1], pad_ref[:, pl.ds(d, tt)],
                    preferred_element_type=jnp.float32)
    h = h + jnp.dot(wtap_ref[2], x,                    # tap 2 == x itself
                    preferred_element_type=jnp.float32)
    h = jnp.maximum(h + bd_ref[...], 0.0)
    z = jnp.dot(w1_ref[...], h, preferred_element_type=jnp.float32) + b1_ref[...]
    return z                                           # [Co, Tt] f32


# ---- pass 1: conv -> ReLU -> 1x1, emit only per-(batch, tile) BN partial sums ----------
def _conv_stats_kernel(halo_ref, x_ref, wtap_ref, bd_ref, w1_ref, b1_ref,
                       sum_ref, ssq_ref, pad_ref, *, dilation):
    x = x_ref[0]                                       # [Ci, Tt]
    halo = halo_ref[0][0]                              # [Ci, 2d]
    z = _conv_relu_1x1(halo, x, wtap_ref, bd_ref, w1_ref, b1_ref, pad_ref, dilation)
    sum_ref[...] = jnp.sum(z, axis=1, keepdims=True)[None, None, :, :]
    ssq_ref[...] = jnp.sum(z * z, axis=1, keepdims=True)[None, None, :, :]


# ---- pass 2: recompute conv, apply precomputed BN scale/shift + residual + mask --------
def _conv_bn_residual_kernel(halo_ref, x_ref, wtap_ref, bd_ref, w1_ref, b1_ref,
                             scale_ref, shift_ref, mask_ref, out_ref, pad_ref,
                             *, dilation):
    x = x_ref[0]                                       # [Ci, Tt]
    halo = halo_ref[0][0]
    z = _conv_relu_1x1(halo, x, wtap_ref, bd_ref, w1_ref, b1_ref, pad_ref, dilation)
    y = (x + scale_ref[...] * z + shift_ref[...]) * mask_ref[0]
    out_ref[0] = y.astype(out_ref.dtype)


def _vmem_limit_bytes():
    """Generation-aware scoped-VMEM limit (v7x: 64 MiB physical; v5e/v6e: 128 MiB)."""
    try:
        cap = int(pltpu.get_tpu_info().vmem_capacity_bytes)
    except Exception:
        cap = 64 * 1024 * 1024
    return max(32 * 1024 * 1024, min((cap * 3) // 4, 96 * 1024 * 1024))


def _pick_t_tile(t, ci, co, d, budget_bytes):
    """Largest 128-multiple T tile dividing T whose per-step working set fits the budget."""
    if t % 128 != 0:
        # TODO(synk): pad T up to a 128 multiple instead of one full-T block.
        return t

    def need(tt):
        f = 4                                          # f32 bytes
        x_tile = ci * tt * f
        out_tile = co * tt * f
        mask_tile = tt * f
        pad_scr = ci * (tt + 2 * d) * f
        live = 2 * co * tt * f                         # h and z values
        return 2 * (x_tile + out_tile + mask_tile) + pad_scr + live

    for cand in (4096, 2048, 1024, 512, 384, 256, 128):
        if t % cand == 0 and need(cand) <= budget_bytes:
            return cand
    return 128


def memory_dilation_residual_forward(x, mask, params, *, dilation,
                                     memory=None, t_tile=None):
    """Returns (out, new_memory).  `memory=None` mimics a freshly-reset module."""
    n, c_in, t = x.shape
    d = dilation
    wd = params["w_dilated"]                           # [Co, Ci, 3]
    co, ci, _ = wd.shape
    assert ci == c_in
    assert co == c_in, "residual x + out requires in_channels == out_channels"

    x = x.astype(jnp.float32)
    if memory is None:
        memory = jnp.zeros((n, c_in, 2 * d), jnp.float32)
    memory = memory.astype(jnp.float32)

    # self._memory(pad_x): last 2*d columns of [memory | x]
    if t >= 2 * d:
        new_memory = x[:, :, t - 2 * d:]
    else:
        new_memory = jnp.concatenate([memory, x], axis=2)[:, :, -(2 * d):]

    vmem_limit = _vmem_limit_bytes()
    if t_tile is None:
        t_tile = _pick_t_tile(t, c_in, co, d, vmem_limit // 2)
    assert t % t_tile == 0 and (t_tile == t or t_tile % 128 == 0)
    assert t_tile >= 2 * d, "T tile must cover the 2*dilation halo"
    n_tiles = t // t_tile

    # Per-tile left context ("halo"): tile j>0 takes the 2d columns preceding its start,
    # tile 0 takes the module memory.  Built once in plain JAX (tiny) so both Pallas grids
    # are fully parallel (no sequential halo carry -> shards across v7x's 2 TensorCores).
    starts = jnp.arange(n_tiles) * t_tile - 2 * d
    cols = jnp.clip(starts[:, None] + jnp.arange(2 * d)[None, :], 0, t - 1)
    halos = jnp.transpose(x[:, :, cols], (2, 0, 1, 3))          # [n_tiles, N, Ci, 2d]
    halos = halos.at[0].set(memory)

    # Parameters reshaped once (pure 2D in-kernel, no batch broadcast anywhere).
    wtap = jnp.transpose(wd, (2, 0, 1)).astype(jnp.float32)     # [3, Co, Ci], tap-major
    bd = params["b_dilated"].reshape(co, 1).astype(jnp.float32)
    w1 = params["w_1x1"].reshape(co, co).astype(jnp.float32)
    b1 = params["b_1x1"].reshape(co, 1).astype(jnp.float32)
    mask1 = mask[:, 0:1, :].astype(jnp.float32)                 # only channel 0 is used

    cparams = pltpu.CompilerParams(
        dimension_semantics=("parallel", "parallel"),
        vmem_limit_bytes=vmem_limit)

    grid = (n, n_tiles)
    halo_spec = pl.BlockSpec((1, 1, c_in, 2 * d), lambda b, j: (j, b, 0, 0))
    x_spec = pl.BlockSpec((1, c_in, t_tile), lambda b, j: (b, 0, j))
    wtap_spec = pl.BlockSpec((3, co, c_in), lambda b, j: (0, 0, 0))
    bd_spec = pl.BlockSpec((co, 1), lambda b, j: (0, 0))
    w1_spec = pl.BlockSpec((co, co), lambda b, j: (0, 0))
    b1_spec = pl.BlockSpec((co, 1), lambda b, j: (0, 0))
    pad_scratch = pltpu.VMEM((c_in, t_tile + 2 * d), jnp.float32)

    # ---- pass 1: BN partial sums only (no [N,Co,T] intermediate ever hits HBM) ----------
    stats_kernel = functools.partial(_conv_stats_kernel, dilation=d)
    tile_sum, tile_ssq = pl.pallas_call(
        stats_kernel,
        out_shape=(jax.ShapeDtypeStruct((n, n_tiles, co, 1), jnp.float32),
                   jax.ShapeDtypeStruct((n, n_tiles, co, 1), jnp.float32)),
        grid_spec=pltpu.PrefetchScalarGridSpec(
            num_scalar_prefetch=0,
            grid=grid,
            in_specs=[halo_spec, x_spec, wtap_spec, bd_spec, w1_spec, b1_spec],
            out_specs=[pl.BlockSpec((1, 1, co, 1), lambda b, j: (b, j, 0, 0)),
                       pl.BlockSpec((1, 1, co, 1), lambda b, j: (b, j, 0, 0))],
            scratch_shapes=[pad_scratch],
        ),
        compiler_params=cparams,
    )(halos, x, wtap, bd, w1, b1)

    # ---- combine BN stats + fold gamma/beta into per-channel scale/shift (tiny, plain JAX)
    count = float(n * t)
    total = jnp.sum(tile_sum, axis=(0, 1)).reshape(co)
    total_sq = jnp.sum(tile_ssq, axis=(0, 1)).reshape(co)
    mean = total / count
    var = jnp.maximum(total_sq / count - mean * mean, 0.0)      # biased var (training BN)
    scale = params["bn_weight"].astype(jnp.float32) * jax.lax.rsqrt(var + EPS)
    shift = params["bn_bias"].astype(jnp.float32) - scale * mean
    scale = scale.reshape(co, 1)
    shift = shift.reshape(co, 1)

    # ---- pass 2: recompute conv (cheaper than a z HBM round-trip), BN + residual + mask -
    out_kernel = functools.partial(_conv_bn_residual_kernel, dilation=d)
    out = pl.pallas_call(
        out_kernel,
        out_shape=jax.ShapeDtypeStruct((n, co, t), jnp.float32),
        grid_spec=pltpu.PrefetchScalarGridSpec(
            num_scalar_prefetch=0,
            grid=grid,
            in_specs=[halo_spec, x_spec, wtap_spec, bd_spec, w1_spec, b1_spec,
                      pl.BlockSpec((co, 1), lambda b, j: (0, 0)),          # scale
                      pl.BlockSpec((co, 1), lambda b, j: (0, 0)),          # shift
                      pl.BlockSpec((1, 1, t_tile), lambda b, j: (b, 0, j))],  # mask
            out_specs=pl.BlockSpec((1, co, t_tile), lambda b, j: (b, 0, j)),
            scratch_shapes=[pad_scratch],
        ),
        compiler_params=cparams,
    )(halos, x, wtap, bd, w1, b1, scale, shift, mask1)

    return out, new_memory


def _reference(x, mask, params, *, dilation, memory=None):
    """Plain-JAX replica of the PyTorch forward for correctness checking."""
    n, c_in, t = x.shape
    d = dilation
    if memory is None:
        memory = jnp.zeros((n, c_in, 2 * d), x.dtype)
    pad_x = jnp.concatenate([memory, x], axis=2)
    wd, bd = params["w_dilated"], params["b_dilated"]
    co = wd.shape[0]
    w1 = params["w_1x1"].reshape(co, co)
    b1 = params["b_1x1"]
    out = jnp.zeros((n, co, t), jnp.float32)
    for k in range(3):
        out = out + jnp.einsum("oi,nit->not", wd[:, :, k],
                               pad_x[:, :, k * d:k * d + t])
    out = jax.nn.relu(out + bd[None, :, None])
    out = jnp.einsum("oi,nit->not", w1, out) + b1[None, :, None]
    mean = out.mean(axis=(0, 2), keepdims=True)
    var = ((out - mean) ** 2).mean(axis=(0, 2), keepdims=True)
    out = (params["bn_weight"][None, :, None] * (out - mean)
           / jnp.sqrt(var + EPS) + params["bn_bias"][None, :, None])
    return (x + out) * mask[:, 0:1, :]


if __name__ == "__main__":
    # residual `x + out` requires in_channels == out_channels
    N, C, T, DIL = 2, 8, 256, 2

    key = jax.random.PRNGKey(0)
    kx, km, k1, k2, k3, k4, kx2, km2 = jax.random.split(key, 8)

    x = jax.random.normal(kx, (N, C, T), jnp.float32)
    mask = (jax.random.uniform(km, (N, C, T)) > 0.3).astype(jnp.float32)

    params = {
        "w_dilated": 0.1 * jax.random.normal(k1, (C, C, 3), jnp.float32),  # Conv1d(C,C,3,dil)
        "b_dilated": 0.1 * jax.random.normal(k2, (C,), jnp.float32),
        "w_1x1":     0.1 * jax.random.normal(k3, (C, C, 1), jnp.float32),  # Conv1d(C,C,1)
        "b_1x1":     0.1 * jax.random.normal(k4, (C,), jnp.float32),
        "bn_weight": jnp.ones((C,), jnp.float32),                          # BN default init
        "bn_bias":   jnp.zeros((C,), jnp.float32),
    }

    # step 1: fresh module (memory = zeros); t_tile=128 -> (N,2)-step grid (exercises halos)
    out, new_memory = memory_dilation_residual_forward(
        x, mask, params, dilation=DIL, t_tile=128)
    out = jax.block_until_ready(out)
    new_memory = jax.block_until_ready(new_memory)

    ref = _reference(x, mask, params, dilation=DIL)
    assert out.shape == (N, C, T) and new_memory.shape == (N, C, 2 * DIL)
    assert jnp.allclose(out, ref, atol=1e-4, rtol=1e-4), "step-1 mismatch vs reference"
    assert jnp.allclose(new_memory, x[:, :, -(2 * DIL):]), "new_memory mismatch"

    # auto tile size (single full-T tile on this small shape) must match too
    out_auto, _ = memory_dilation_residual_forward(x, mask, params, dilation=DIL)
    out_auto = jax.block_until_ready(out_auto)
    assert jnp.allclose(out_auto, ref, atol=1e-4, rtol=1e-4), "auto-tile mismatch vs reference"

    # step 2: carry the memory into the next chunk (non-zero left context)
    x2 = jax.random.normal(kx2, (N, C, T), jnp.float32)
    mask2 = (jax.random.uniform(km2, (N, C, T)) > 0.3).astype(jnp.float32)
    out2, _ = memory_dilation_residual_forward(
        x2, mask2, params, dilation=DIL, memory=new_memory, t_tile=128)
    out2 = jax.block_until_ready(out2)
    ref2 = _reference(x2, mask2, params, dilation=DIL, memory=new_memory)
    assert jnp.allclose(out2, ref2, atol=1e-4, rtol=1e-4), "step-2 mismatch vs reference"

    print("KERNEL_OK")
</pallas_src>

<mosaic_0001>
module attributes {stable_mosaic.version = 11 : i64} {
  func.func @_conv_stats_kernel(%arg0: i32, %arg1: i32, %arg2: memref<1x1x8x4xf32, #tpu.memory_space<vmem>>, %arg3: memref<1x8x128xf32, #tpu.memory_space<vmem>>, %arg4: memref<3x8x8xf32, #tpu.memory_space<vmem>>, %arg5: memref<8x1xf32, #tpu.memory_space<vmem>>, %arg6: memref<8x8xf32, #tpu.memory_space<vmem>>, %arg7: memref<8x1xf32, #tpu.memory_space<vmem>>, %arg8: memref<1x1x8x1xf32, #tpu.memory_space<vmem>>, %arg9: memref<1x1x8x1xf32, #tpu.memory_space<vmem>>, %arg10: memref<8x132xf32, #tpu.memory_space<vmem>>) attributes {dimension_semantics = [#tpu.dimension_semantics<parallel>, #tpu.dimension_semantics<parallel>], iteration_bounds = array<i64: 2, 2>, scalar_prefetch = 0 : i64, scratch_operands = 1 : i64, tpu.core_type = #tpu.core_type<tc>, window_params = [{transform_indices = @transform_0, window_bounds = array<i64: 1, 1, 8, 4>}, {transform_indices = @transform_1, window_bounds = array<i64: 1, 8, 128>}, {pipeline_mode = #tpu.pipeline_mode<synchronous>, transform_indices = @transform_2, window_bounds = array<i64: 3, 8, 8>}, {pipeline_mode = #tpu.pipeline_mode<synchronous>, transform_indices = @transform_3, window_bounds = array<i64: 8, 1>}, {pipeline_mode = #tpu.pipeline_mode<synchronous>, transform_indices = @transform_4, window_bounds = array<i64: 8, 8>}, {pipeline_mode = #tpu.pipeline_mode<synchronous>, transform_indices = @transform_5, window_bounds = array<i64: 8, 1>}, {transform_indices = @transform_6, window_bounds = array<i64: 1, 1, 8, 1>}, {transform_indices = @transform_7, window_bounds = array<i64: 1, 1, 8, 1>}]} {
    %c0 = arith.constant 0 : index
    %c0_0 = arith.constant 0 : index
    %c0_1 = arith.constant 0 : index
    %0 = vector.load %arg3[%c0, %c0_0, %c0_1] : memref<1x8x128xf32, #tpu.memory_space<vmem>>, vector<1x8x128xf32>
    %1 = vector.shape_cast %0 : vector<1x8x128xf32> to vector<8x128xf32>
    %c0_2 = arith.constant 0 : index
    %c0_3 = arith.constant 0 : index
    %c0_4 = arith.constant 0 : index
    %c0_5 = arith.constant 0 : index
    %2 = vector.load %arg2[%c0_2, %c0_3, %c0_4, %c0_5] : memref<1x1x8x4xf32, #tpu.memory_space<vmem>>, vector<1x1x8x4xf32>
    %3 = vector.shape_cast %2 : vector<1x1x8x4xf32> to vector<1x8x4xf32>
    %4 = vector.shape_cast %3 : vector<1x8x4xf32> to vector<8x4xf32>
    %c0_6 = arith.constant 0 : index
    %c0_7 = arith.constant 0 : index
    %5 = vector.load %arg10[%c0_6, %c0_7] : memref<8x132xf32, #tpu.memory_space<vmem>>, vector<8x4xf32>
    tpu.vector_store %arg10[%c0_6, %c0_7], %4 {strides = array<i32>} : memref<8x132xf32, #tpu.memory_space<vmem>>, vector<8x4xf32>,
    %c0_8 = arith.constant 0 : index
    %c4 = arith.constant 4 : index
    %6 = vector.load %arg10[%c0_8, %c4] : memref<8x132xf32, #tpu.memory_space<vmem>>, vector<8x128xf32>
    tpu.vector_store %arg10[%c0_8, %c4], %1 {strides = array<i32>} : memref<8x132xf32, #tpu.memory_space<vmem>>, vector<8x128xf32>,
    %c0_9 = arith.constant 0 : index
    %c0_10 = arith.constant 0 : index
    %c0_11 = arith.constant 0 : index
    %7 = vector.load %arg4[%c0_9, %c0_10, %c0_11] : memref<3x8x8xf32, #tpu.memory_space<vmem>>, vector<1x8x8xf32>
    %8 = vector.shape_cast %7 : vector<1x8x8xf32> to vector<8x8xf32>
    %c0_12 = arith.constant 0 : index
    %c0_13 = arith.constant 0 : index
    %9 = vector.load %arg10[%c0_12, %c0_13] : memref<8x132xf32, #tpu.memory_space<vmem>>, vector<8x128xf32>
    %cst = arith.constant dense<0.000000e+00> : vector<8x128xf32>
    %10 = tpu.matmul %8, %9, %cst {dimension_numbers = #tpu.dot_dimension_numbers<[1], [0], [0], [1], [0, 0, 1, 1], [], []>} : vector<8x8xf32>, vector<8x128xf32>, vector<8x128xf32> -> vector<8x128xf32>
    %c1 = arith.constant 1 : index
    %c0_14 = arith.constant 0 : index
    %c0_15 = arith.constant 0 : index
    %11 = vector.load %arg4[%c1, %c0_14, %c0_15] : memref<3x8x8xf32, #tpu.memory_space<vmem>>, vector<1x8x8xf32>
    %12 = vector.shape_cast %11 : vector<1x8x8xf32> to vector<8x8xf32>
    %c0_16 = arith.constant 0 : index
    %c2 = arith.constant 2 : index
    %13 = vector.load %arg10[%c0_16, %c2] : memref<8x132xf32, #tpu.memory_space<vmem>>, vector<8x128xf32>
    %cst_17 = arith.constant dense<0.000000e+00> : vector<8x128xf32>
    %14 = tpu.matmul %12, %13, %cst_17 {dimension_numbers = #tpu.dot_dimension_numbers<[1], [0], [0], [1], [0, 0, 1, 1], [], []>} : vector<8x8xf32>, vector<8x128xf32>, vector<8x128xf32> -> vector<8x128xf32>
    %15 = arith.addf %10, %14 : vector<8x128xf32>
    %c2_18 = arith.constant 2 : index
    %c0_19 = arith.constant 0 : index
    %c0_20 = arith.constant 0 : index
    %16 = vector.load %arg4[%c2_18, %c0_19, %c0_20] : memref<3x8x8xf32, #tpu.memory_space<vmem>>, vector<1x8x8xf32>
    %17 = vector.shape_cast %16 : vector<1x8x8xf32> to vector<8x8xf32>
    %cst_21 = arith.constant dense<0.000000e+00> : vector<8x128xf32>
    %18 = tpu.matmul %17, %1, %cst_21 {dimension_numbers = #tpu.dot_dimension_numbers<[1], [0], [0], [1], [0, 0, 1, 1], [], []>} : vector<8x8xf32>, vector<8x128xf32>, vector<8x128xf32> -> vector<8x128xf32>
    %19 = arith.addf %15, %18 : vector<8x128xf32>
    %c0_22 = arith.constant 0 : index
    %c0_23 = arith.constant 0 : index
    %20 = vector.load %arg5[%c0_22, %c0_23] : memref<8x1xf32, #tpu.memory_space<vmem>>, vector<8x1xf32>
    %21 = vector.broadcast %20 : vector<8x1xf32> to vector<8x128xf32>
    %22 = arith.addf %19, %21 : vector<8x128xf32>
    %cst_24 = arith.constant 0.000000e+00 : f32
    %23 = vector.broadcast %cst_24 : f32 to vector<8x128xf32>
    %24 = arith.maximumf %22, %23 : vector<8x128xf32>
    %c0_25 = arith.constant 0 : index
    %c0_26 = arith.constant 0 : index
    %25 = vector.load %arg6[%c0_25, %c0_26] : memref<8x8xf32, #tpu.memory_space<vmem>>, vector<8x8xf32>
    %cst_27 = arith.constant dense<0.000000e+00> : vector<8x128xf32>
    %26 = tpu.matmul %25, %24, %cst_27 {dimension_numbers = #tpu.dot_dimension_numbers<[1], [0], [0], [1], [0, 0, 1, 1], [], []>} : vector<8x8xf32>, vector<8x128xf32>, vector<8x128xf32> -> vector<8x128xf32>
    %c0_28 = arith.constant 0 : index
    %c0_29 = arith.constant 0 : index
    %27 = vector.load %arg7[%c0_28, %c0_29] : memref<8x1xf32, #tpu.memory_space<vmem>>, vector<8x1xf32>
    %28 = vector.broadcast %27 : vector<8x1xf32> to vector<8x128xf32>
    %29 = arith.addf %26, %28 : vector<8x128xf32>
    %cst_30 = arith.constant dense<0.000000e+00> : vector<8xf32>
    %30 = vector.multi_reduction <add>, %29, %cst_30 [1] : vector<8x128xf32> to vector<8xf32>
    %31 = vector.shape_cast %30 : vector<8xf32> to vector<8x1xf32>
    %32 = vector.shape_cast %31 : vector<8x1xf32> to vector<1x1x8x1xf32>
    %c0_31 = arith.constant 0 : index
    %c0_32 = arith.constant 0 : index
    %c0_33 = arith.constant 0 : index
    %c0_34 = arith.constant 0 : index
    %33 = vector.load %arg8[%c0_31, %c0_32, %c0_33, %c0_34] : memref<1x1x8x1xf32, #tpu.memory_space<vmem>>, vector<1x1x8x1xf32>
    tpu.vector_store %arg8[%c0_31, %c0_32, %c0_33, %c0_34], %32 {strides = array<i32>} : memref<1x1x8x1xf32, #tpu.memory_space<vmem>>, vector<1x1x8x1xf32>,
    %34 = arith.mulf %29, %29 : vector<8x128xf32>
    %cst_35 = arith.constant dense<0.000000e+00> : vector<8xf32>
    %35 = vector.multi_reduction <add>, %34, %cst_35 [1] : vector<8x128xf32> to vector<8xf32>
    %36 = vector.shape_cast %35 : vector<8xf32> to vector<8x1xf32>
    %37 = vector.shape_cast %36 : vector<8x1xf32> to vector<1x1x8x1xf32>
    %c0_36 = arith.constant 0 : index
    %c0_37 = arith.constant 0 : index
    %c0_38 = arith.constant 0 : index
    %c0_39 = arith.constant 0 : index
    %38 = vector.load %arg9[%c0_36, %c0_37, %c0_38, %c0_39] : memref<1x1x8x1xf32, #tpu.memory_space<vmem>>, vector<1x1x8x1xf32>
    tpu.vector_store %arg9[%c0_36, %c0_37, %c0_38, %c0_39], %37 {strides = array<i32>} : memref<1x1x8x1xf32, #tpu.memory_space<vmem>>, vector<1x1x8x1xf32>,
    return
  }
  func.func @transform_0(%arg0: i32, %arg1: i32) -> (i32, i32, i32, i32) {
    %c0_i32 = arith.constant 0 : i32
    %c0_i32_0 = arith.constant 0 : i32
    %c0_i32_1 = arith.constant 0 : i32
    return %arg1, %arg0, %c0_i32, %c0_i32_0 : i32, i32, i32, i32
  }
  func.func @transform_1(%arg0: i32, %arg1: i32) -> (i32, i32, i32) {
    %c0_i32 = arith.constant 0 : i32
    %c0_i32_0 = arith.constant 0 : i32
    return %arg0, %c0_i32, %arg1 : i32, i32, i32
  }
  func.func @transform_2(%arg0: i32, %arg1: i32) -> (i32, i32, i32) {
    %c0_i32 = arith.constant 0 : i32
    %c0_i32_0 = arith.constant 0 : i32
    %c0_i32_1 = arith.constant 0 : i32
    %c0_i32_2 = arith.constant 0 : i32
    return %c0_i32, %c0_i32_0, %c0_i32_1 : i32, i32, i32
  }
  func.func @transform_3(%arg0: i32, %arg1: i32) -> (i32, i32) {
    %c0_i32 = arith.constant 0 : i32
    %c0_i32_0 = arith.constant 0 : i32
    %c0_i32_1 = arith.constant 0 : i32
    return %c0_i32, %c0_i32_0 : i32, i32
  }
  func.func @transform_4(%arg0: i32, %arg1: i32) -> (i32, i32) {
    %c0_i32 = arith.constant 0 : i32
    %c0_i32_0 = arith.constant 0 : i32
    %c0_i32_1 = arith.constant 0 : i32
    return %c0_i32, %c0_i32_0 : i32, i32
  }
  func.func @transform_5(%arg0: i32, %arg1: i32) -> (i32, i32) {
    %c0_i32 = arith.constant 0 : i32
    %c0_i32_0 = arith.constant 0 : i32
    %c0_i32_1 = arith.constant 0 : i32
    return %c0_i32, %c0_i32_0 : i32, i32
  }
  func.func @transform_6(%arg0: i32, %arg1: i32) -> (i32, i32, i32, i32) {
    %c0_i32 = arith.constant 0 : i32
    %c0_i32_0 = arith.constant 0 : i32
    %c0_i32_1 = arith.constant 0 : i32
    return %arg0, %arg1, %c0_i32, %c0_i32_0 : i32, i32, i32, i32
  }
  func.func @transform_7(%arg0: i32, %arg1: i32) -> (i32, i32, i32, i32) {
    %c0_i32 = arith.constant 0 : i32
    %c0_i32_0 = arith.constant 0 : i32
    %c0_i32_1 = arith.constant 0 : i32
    return %arg0, %arg1, %c0_i32, %c0_i32_0 : i32, i32, i32, i32
  }
}

</mosaic_0001>

<llo_original>
// kernel: tpu_custom_call.1
$region0: #{tpu_custom_call.1}
  #allocation0 [shape = 'u32[]', space=smem, size = 0x4, offset = 0x4, fixed_abs, tag = 'smem constant byte address 0x4 - core index']
  #allocation1 [shape = 'u32[144,128]{1,0:T(1,128)}', space=vmem, size = 0x12000, scoped, tag = 'internal scratch']
  #allocation2 [shape = 'f32[8,132]{1,0:T(8,128)}', space=vmem, size = 0x2000, scoped, tag = 'scratch operand']
  %s0 = inlined_call_operand.vmem [shape: f32[2,2,8,4], index: 0, kind: input, shape index: {}]
  %s1 = inlined_call_operand.vmem [shape: f32[2,8,256], index: 1, kind: input, shape index: {}]
  %s2 = inlined_call_operand.vmem [shape: f32[3,8,8], index: 2, kind: input, shape index: {}]
  %s3 = inlined_call_operand.vmem [shape: f32[8,1], index: 3, kind: input, shape index: {}]
  %s4 = inlined_call_operand.vmem [shape: f32[8,8], index: 4, kind: input, shape index: {}]
  %s5 = inlined_call_operand.vmem [shape: f32[8,1], index: 5, kind: input, shape index: {}]
  %s6 = inlined_call_operand.vmem [shape: f32[2,2,8,1], index: 6, kind: output, shape index: {0}]
  %s7 = inlined_call_operand.vmem [shape: f32[2,2,8,1], index: 7, kind: output, shape index: {1}]
  %8 = xla_tuple %s6, %s7
  %s9 = sld [smem:[#allocation0]]
  $region65: #{tpu_custom_call.1} parent=0
    _
  %s11 = ssub.s32 1, %s9
  %s12 = scalar_select 0, %s11, %s9
  loop: start=0, step=1, limit=6
  $region2: #{tpu_custom_call.1} parent=0 // loop_pre_header
    _
  $region3: #{tpu_custom_call.1} parent=0 // loop_header
    %s14 = sphi 0, %s18
    %p15 = scmp.ge.s32.totalorder %s14, 6
    %s21 = sphi 0, %s33
    %s22 = sphi 0, %s29
    %s23 = sphi 0, %s21
    %s24 = sphi 0, %s22
    %s25 = sphi 0, %s23
    %s26 = sphi 0, %s24
    %s38 = sphi 0, %s40
    %s41 = sphi 0, %s38
    %s42 = sphi 0, %s41
    %s58 = sphi 0, %s42
    %s66 = sphi 0, %s68
    %s69 = sphi 0, %s66
    %s70 = sphi 0, %s69
    %s86 = sphi 0, %s70
    %s90 = sphi 0, %s90
    %s92 = sphi 0, %s90
    %s93 = sphi 0, %s92
    %s107 = sphi 0, %s93
    %s111 = sphi 0, %s111
    %s113 = sphi 0, %s111
    %s114 = sphi 0, %s113
    %s128 = sphi 0, %s114
    %s132 = sphi 0, %s132
    %s134 = sphi 0, %s132
    %s135 = sphi 0, %s134
    %s149 = sphi 0, %s135
    %s153 = sphi 0, %s153
    %s155 = sphi 0, %s153
    %s156 = sphi 0, %s155
    %s170 = sphi 0, %s156
    %s178 = sphi 0, %s180
    %s181 = sphi 0, %s178
    %s182 = sphi 0, %s181
    %s198 = sphi 0, %s182
    %s206 = sphi 0, %s208
    %s209 = sphi 0, %s206
    %s210 = sphi 0, %s209
    %s226 = sphi 0, %s210
  $region4: #{tpu_custom_call.1} parent=0 // loop_header_branch
    %17 = sbr.rel (%p15) target = $region8
  $region5: #{tpu_custom_call.1} parent=0 // loop_body
    %s19 = ssub.s32 %s14, 1
    %s20 = ssub.s32 %s14, 2
    %s27 = sadd.s32 1, %s22
    %p28 = scmp.ge.s32.totalorder %s27, 2
    %s29 = scalar_select %p28, 0, %s27
    %s30 = sadd.s32 1, %s21
    %s31 = scalar_select %p28, %s30, %s21
    %p32 = scmp.ge.s32.totalorder %s31, 2
    %s33 = scalar_select %p32, 0, %s31
    %s34 = ssub.s32 %s22, %s29
    %s35 = ssub.s32 %s21, %s33
    %s36 = sor.u32 %s34, %s35
    %p37 = scmp.eq.s32.totalorder %s36, 0
    %s39 = sadd.s32 %s38, 1
    %s40 = scalar_select %p37, %s38, %s39
    %p43 = pneg %p37
    %p44 = scmp.eq.s32.totalorder %s14, 3
    %p45 = por %p43, %p44
    %p46 = scmp.ne.s32.totalorder %s38, %s41
    %p47 = scmp.eq.s32.totalorder %s14, 0
    %p48 = por %p46, %p47
    %p49 = scmp.ne.s32.totalorder %s38, %s41
    %p50 = scmp.eq.s32.totalorder %s19, 3
    %p51 = por %p49, %p50
    %p52 = scmp.ne.s32.totalorder %s41, %s42
    %p53 = scmp.eq.s32.totalorder %s19, 0
    %p54 = por %p52, %p53
    %p55 = scmp.ne.s32.totalorder %s41, %s42
    %p56 = scmp.eq.s32.totalorder %s20, 3
    %p57 = por %p55, %p56
    %p59 = scmp.ne.s32.totalorder %s42, %s58
    %p60 = scmp.eq.s32.totalorder %s20, 0
    %p61 = por %p59, %p60
    %s62 = ssub.s32 %s21, %s33
    %s63 = ssub.s32 %s22, %s29
    %s64 = sor.u32 %s62, %s63
    %p65 = scmp.eq.s32.totalorder %s64, 0
    %s67 = sadd.s32 %s66, 1
    %s68 = scalar_select %p65, %s66, %s67
    %p71 = pneg %p65
    %p72 = scmp.eq.s32.totalorder %s14, 3
    %p73 = por %p71, %p72
    %p74 = scmp.ne.s32.totalorder %s66, %s69
    %p75 = scmp.eq.s32.totalorder %s14, 0
    %p76 = por %p74, %p75
    %p77 = scmp.ne.s32.totalorder %s66, %s69
    %p78 = scmp.eq.s32.totalorder %s19, 3
    %p79 = por %p77, %p78
    %p80 = scmp.ne.s32.totalorder %s69, %s70
    %p81 = scmp.eq.s32.totalorder %s19, 0
    %p82 = por %p80, %p81
    %p83 = scmp.ne.s32.totalorder %s69, %s70
    %p84 = scmp.eq.s32.totalorder %s20, 3
    %p85 = por %p83, %p84
    %p87 = scmp.ne.s32.totalorder %s70, %s86
    %p88 = scmp.eq.s32.totalorder %s20, 0
    %p89 = por %p87, %p88
    %s91 = sadd.s32 %s90, 1
    %p94 = scmp.eq.s32.totalorder %s14, 3
    %p95 = scmp.ne.s32.totalorder %s90, %s92
    %p96 = scmp.eq.s32.totalorder %s14, 0
    %p97 = por %p95, %p96
    %p98 = scmp.ne.s32.totalorder %s90, %s92
    %p99 = scmp.eq.s32.totalorder %s19, 3
    %p100 = por %p98, %p99
    %p101 = scmp.ne.s32.totalorder %s92, %s93
    %p102 = scmp.eq.s32.totalorder %s19, 0
    %p103 = por %p101, %p102
    %p104 = scmp.ne.s32.totalorder %s92, %s93
    %p105 = scmp.eq.s32.totalorder %s20, 3
    %p106 = por %p104, %p105
    %p108 = scmp.ne.s32.totalorder %s93, %s107
    %p109 = scmp.eq.s32.totalorder %s20, 0
    %p110 = por %p108, %p109
    %s112 = sadd.s32 %s111, 1
    %p115 = scmp.eq.s32.totalorder %s14, 3
    %p116 = scmp.ne.s32.totalorder %s111, %s113
    %p117 = scmp.eq.s32.totalorder %s14, 0
    %p118 = por %p116, %p117
    %p119 = scmp.ne.s32.totalorder %s111, %s113
    %p120 = scmp.eq.s32.totalorder %s19, 3
    %p121 = por %p119, %p120
    %p122 = scmp.ne.s32.totalorder %s113, %s114
    %p123 = scmp.eq.s32.totalorder %s19, 0
    %p124 = por %p122, %p123
    %p125 = scmp.ne.s32.totalorder %s113, %s114
    %p126 = scmp.eq.s32.totalorder %s20, 3
    %p127 = por %p125, %p126
    %p129 = scmp.ne.s32.totalorder %s114, %s128
    %p130 = scmp.eq.s32.totalorder %s20, 0
    %p131 = por %p129, %p130
    %s133 = sadd.s32 %s132, 1
    %p136 = scmp.eq.s32.totalorder %s14, 3
    %p137 = scmp.ne.s32.totalorder %s132, %s134
    %p138 = scmp.eq.s32.totalorder %s14, 0
    %p139 = por %p137, %p138
    %p140 = scmp.ne.s32.totalorder %s132, %s134
    %p141 = scmp.eq.s32.totalorder %s19, 3
    %p142 = por %p140, %p141
    %p143 = scmp.ne.s32.totalorder %s134, %s135
    %p144 = scmp.eq.s32.totalorder %s19, 0
    %p145 = por %p143, %p144
    %p146 = scmp.ne.s32.totalorder %s134, %s135
    %p147 = scmp.eq.s32.totalorder %s20, 3
    %p148 = por %p146, %p147
    %p150 = scmp.ne.s32.totalorder %s135, %s149
    %p151 = scmp.eq.s32.totalorder %s20, 0
    %p152 = por %p150, %p151
    %s154 = sadd.s32 %s153, 1
    %p157 = scmp.eq.s32.totalorder %s14, 3
    %p158 = scmp.ne.s32.totalorder %s153, %s155
    %p159 = scmp.eq.s32.totalorder %s14, 0
    %p160 = por %p158, %p159
    %p161 = scmp.ne.s32.totalorder %s153, %s155
    %p162 = scmp.eq.s32.totalorder %s19, 3
    %p163 = por %p161, %p162
    %p164 = scmp.ne.s32.totalorder %s155, %s156
    %p165 = scmp.eq.s32.totalorder %s19, 0
    %p166 = por %p164, %p165
    %p167 = scmp.ne.s32.totalorder %s155, %s156
    %p168 = scmp.eq.s32.totalorder %s20, 3
    %p169 = por %p167, %p168
    %p171 = scmp.ne.s32.totalorder %s156, %s170
    %p172 = scmp.eq.s32.totalorder %s20, 0
    %p173 = por %p171, %p172
    %s174 = ssub.s32 %s21, %s33
    %s175 = ssub.s32 %s22, %s29
    %s176 = sor.u32 %s174, %s175
    %p177 = scmp.eq.s32.totalorder %s176, 0
    %s179 = sadd.s32 %s178, 1
    %s180 = scalar_select %p177, %s178, %s179
    %p183 = pneg %p177
    %p184 = scmp.eq.s32.totalorder %s14, 3
    %p185 = por %p183, %p184
    %p186 = scmp.ne.s32.totalorder %s178, %s181
    %p187 = scmp.eq.s32.totalorder %s14, 0
    %p188 = por %p186, %p187
    %p189 = scmp.ne.s32.totalorder %s178, %s181
    %p190 = scmp.eq.s32.totalorder %s19, 3
    %p191 = por %p189, %p190
    %p192 = scmp.ne.s32.totalorder %s181, %s182
    %p193 = scmp.eq.s32.totalorder %s19, 0
    %p194 = por %p192, %p193
    %p195 = scmp.ne.s32.totalorder %s181, %s182
    %p196 = scmp.eq.s32.totalorder %s20, 3
    %p197 = por %p195, %p196
    %p199 = scmp.ne.s32.totalorder %s182, %s198
    %p200 = scmp.eq.s32.totalorder %s20, 0
    %p201 = por %p199, %p200
    %s202 = ssub.s32 %s21, %s33
    %s203 = ssub.s32 %s22, %s29
    %s204 = sor.u32 %s202, %s203
    %p205 = scmp.eq.s32.totalorder %s204, 0
    %s207 = sadd.s32 %s206, 1
    %s208 = scalar_select %p205, %s206, %s207
    %p211 = pneg %p205
    %p212 = scmp.eq.s32.totalorder %s14, 3
    %p213 = por %p211, %p212
    %p214 = scmp.ne.s32.totalorder %s206, %s209
    %p215 = scmp.eq.s32.totalorder %s14, 0
    %p216 = por %p214, %p215
    %p217 = scmp.ne.s32.totalorder %s206, %s209
    %p218 = scmp.eq.s32.totalorder %s19, 3
    %p219 = por %p217, %p218
    %p220 = scmp.ne.s32.totalorder %s209, %s210
    %p221 = scmp.eq.s32.totalorder %s19, 0
    %p222 = por %p220, %p221
    %p223 = scmp.ne.s32.totalorder %s209, %s210
    %p224 = scmp.eq.s32.totalorder %s20, 3
    %p225 = por %p223, %p224
    %p227 = scmp.ne.s32.totalorder %s210, %s226
    %p228 = scmp.eq.s32.totalorder %s20, 0
    %p229 = por %p227, %p228
    %p230 = scmp.le.s32.totalorder 1, %s14
    %p231 = scmp.lt.s32.totalorder %s14, 5
    %p232 = pnand %p230, %p231
    %p233 = pneg %p232
    // Predicated region
    $region9: #{tpu_custom_call.1} parent=5 // pred_check
      _
    $region10: #{tpu_custom_call.1} parent=5 // pred_check_branch
      %235 = sbr.rel (%p232) target = $region12
    $region11: #{tpu_custom_call.1} parent=5 // pred_region
      %s236 = ssub.s32 %s14, 1
      // Predicated region
      $region13: #{tpu_custom_call.1} parent=11 // pred_check
        %p237 = pneg %p103
      $region14: #{tpu_custom_call.1} parent=11 // pred_check_branch
        %239 = sbr.rel (%p237) target = $region16
      $region15: #{tpu_custom_call.1} parent=11 // pred_region
        _
      $region16: #{tpu_custom_call.1} parent=11 // pred_fallthru
        _
      // Predicated region
      $region17: #{tpu_custom_call.1} parent=11 // pred_check
        %p240 = pneg %p124
      $region18: #{tpu_custom_call.1} parent=11 // pred_check_branch
        %242 = sbr.rel (%p240) target = $region20
      $region19: #{tpu_custom_call.1} parent=11 // pred_region
        _
      $region20: #{tpu_custom_call.1} parent=11 // pred_fallthru
        _
      // Predicated region
      $region21: #{tpu_custom_call.1} parent=11 // pred_check
        %p243 = pneg %p145
      $region22: #{tpu_custom_call.1} parent=11 // pred_check_branch
        %245 = sbr.rel (%p243) target = $region24
      $region23: #{tpu_custom_call.1} parent=11 // pred_region
        _
      $region24: #{tpu_custom_call.1} parent=11 // pred_fallthru
        _
      // Predicated region
      $region25: #{tpu_custom_call.1} parent=11 // pred_check
        %p246 = pneg %p166
      $region26: #{tpu_custom_call.1} parent=11 // pred_check_branch
        %248 = sbr.rel (%p246) target = $region28
      $region27: #{tpu_custom_call.1} parent=11 // pred_region
        _
      $region28: #{tpu_custom_call.1} parent=11 // pred_fallthru
        _
    $region12: #{tpu_custom_call.1} parent=5 // pred_fallthru
      _
    %p249 = scmp.lt.s32.totalorder %s14, 4
    // Predicated region
    $region29: #{tpu_custom_call.1} parent=5 // pred_check
      %p250 = pneg %p249
    $region30: #{tpu_custom_call.1} parent=5 // pred_check_branch
      %252 = sbr.rel (%p250) target = $region32
    $region31: #{tpu_custom_call.1} parent=5 // pred_region
      // Predicated region
      $region33: #{tpu_custom_call.1} parent=31 // pred_check
        %p253 = pneg %p48
      $region34: #{tpu_custom_call.1} parent=31 // pred_check_branch
        %255 = sbr.rel (%p253) target = $region36
      $region35: #{tpu_custom_call.1} parent=31 // pred_region
        %p256 = scmp.lt.s32.totalorder %s22, 1
        %s257 = scalar_select %p256, %s22, 1
        %p258 = scmp.lt.s32.totalorder %s21, 1
        %s259 = scalar_select %p258, %s21, 1
        %s260 = smul.addr %s257, 2
        %s261 = sadd.s32 %s259, %s260
        %s262 = smul.addr %s261, 8
        %s263 = scalar_lea.vmem %s0, %s262
      $region36: #{tpu_custom_call.1} parent=31 // pred_fallthru
        _
      // Predicated region
      $region37: #{tpu_custom_call.1} parent=31 // pred_check
        %p264 = pneg %p76
      $region38: #{tpu_custom_call.1} parent=31 // pred_check_branch
        %266 = sbr.rel (%p264) target = $region40
      $region39: #{tpu_custom_call.1} parent=31 // pred_region
        %p267 = scmp.lt.s32.totalorder %s21, 1
        %s268 = scalar_select %p267, %s21, 1
        %p269 = scmp.lt.s32.totalorder %s22, 1
        %s270 = scalar_select %p269, %s22, 1
        %s271 = smul.addr %s268, 2
        %s272 = sadd.s32 %s270, %s271
        %s273 = smul.addr %s272, 8
        %s274 = scalar_lea.vmem %s1, %s273
      $region40: #{tpu_custom_call.1} parent=31 // pred_fallthru
        _
    $region32: #{tpu_custom_call.1} parent=5 // pred_fallthru
      _
    %p275 = scmp.le.s32.totalorder 1, %s14
    %p276 = scmp.lt.s32.totalorder %s14, 5
    %p277 = pnand %p275, %p276
    %p278 = pneg %p277
    // Predicated region
    $region41: #{tpu_custom_call.1} parent=5 // pred_check
      _
    $region42: #{tpu_custom_call.1} parent=5 // pred_check_branch
      %280 = sbr.rel (%p277) target = $region44
    $region43: #{tpu_custom_call.1} parent=5 // pred_region
      %s281 = ssub.s32 %s14, 1
      %p282 = scmp.lt.s32.totalorder %s24, 1
      %s283 = scalar_select %p282, %s24, 1
      %p284 = scmp.lt.s32.totalorder %s23, 1
      %s285 = scalar_select %p284, %s23, 1
      %s286 = smul.addr %s283, 2
      %s287 = sadd.s32 %s285, %s286
      %s288 = smul.addr %s287, 8
      %s289 = scalar_lea.vmem %s0, %s288
      %p290 = pneg %p54
      %p291 = pneg %p51
      %p292 = scmp.lt.s32.totalorder %s23, 1
      %s293 = scalar_select %p292, %s23, 1
      %p294 = scmp.lt.s32.totalorder %s24, 1
      %s295 = scalar_select %p294, %s24, 1
      %s296 = smul.addr %s293, 2
      %s297 = sadd.s32 %s295, %s296
      %s298 = smul.addr %s297, 8
      %s299 = scalar_lea.vmem %s1, %s298
      %p300 = pneg %p82
      %p301 = pneg %p79
      %p302 = pneg %p103
      %p303 = pneg %p100
      %p304 = pneg %p124
      %p305 = pneg %p121
      %p306 = pneg %p145
      %p307 = pneg %p142
      %p308 = pneg %p166
      %p309 = pneg %p163
      %p310 = pneg %p194
      %p311 = pneg %p191
      %p312 = scmp.lt.s32.totalorder %s23, 1
      %s313 = scalar_select %p312, %s23, 1
      %p314 = scmp.lt.s32.totalorder %s24, 1
      %s315 = scalar_select %p314, %s24, 1
      %s316 = smul.addr %s313, 2
      %s317 = sadd.s32 %s315, %s316
      %s318 = smul.addr %s317, 8
      %s319 = scalar_lea.vmem %s6, %s318
      %p320 = pneg %p222
      %p321 = pneg %p219
      %p322 = scmp.lt.s32.totalorder %s23, 1
      %s323 = scalar_select %p322, %s23, 1
      %p324 = scmp.lt.s32.totalorder %s24, 1
      %s325 = scalar_select %p324, %s24, 1
      %s326 = smul.addr %s323, 2
      %s327 = sadd.s32 %s325, %s326
      %s328 = smul.addr %s327, 8
      %s329 = scalar_lea.vmem %s7, %s328
      %p330 = scmp.lt.s32.totalorder %s24, 1
      %s331 = scalar_select %p330, %s24, 1
      %p332 = scmp.lt.s32.totalorder %s23, 1
      %s333 = scalar_select %p332, %s23, 1
      %s334 = smul.addr %s331, 2
      %s335 = sadd.s32 %s333, %s334
      %s336 = smul.addr %s335, 8
      %s337 = scalar_lea.vmem %s0, %s336
      %p338 = scmp.lt.s32.totalorder %s23, 1
      %s339 = scalar_select %p338, %s23, 1
      %p340 = scmp.lt.s32.totalorder %s24, 1
      %s341 = scalar_select %p340, %s24, 1
      %s342 = smul.addr %s339, 2
      %s343 = sadd.s32 %s341, %s342
      %s344 = smul.addr %s343, 8
      %s345 = scalar_lea.vmem %s1, %s344
      %p346 = scmp.lt.s32.totalorder %s23, 1
      %s347 = scalar_select %p346, %s23, 1
      %p348 = scmp.lt.s32.totalorder %s24, 1
      %s349 = scalar_select %p348, %s24, 1
      %s350 = smul.addr %s347, 2
      %s351 = sadd.s32 %s349, %s350
      %s352 = smul.addr %s351, 8
      %s353 = scalar_lea.vmem %s6, %s352
      %p354 = scmp.lt.s32.totalorder %s23, 1
      %s355 = scalar_select %p354, %s23, 1
      %p356 = scmp.lt.s32.totalorder %s24, 1
      %s357 = scalar_select %p356, %s24, 1
      %s358 = smul.addr %s355, 2
      %s359 = sadd.s32 %s357, %s358
      %s360 = smul.addr %s359, 8
      %s361 = scalar_lea.vmem %s7, %s360
      %v362 = vld [vmem:[%s345] sm:$0xff]
      %v363 = vld [vmem:[%s337] sm:$0xff]
      %vm364 = vcmask 31744
      %365 = vst.msk [vmem:[#allocation2] sm:$0xff] %vm364, %v363
      %367 = vrot.lane.b32.xlu0 %v362, 4
      %v368 = vpop.permute.xlu0 %367
      %vm370 = vcmask 1047584
      %371 = vst.msk [vmem:[#allocation2] sm:$0xff] %vm370, %v368
      %372 = vst.msk [vmem:[#allocation2 + $0x8] sm:$0xff] %vm364, %v368
      %v373 = vld [vmem:[%s2] sm:$0xff]
      %v374 = vld [vmem:[#allocation2] sm:$0xff]
      %s375 = scalar_lea.vmem %s2, 8
      %v376 = vld [vmem:[%s375] sm:$0xff]
      %v377 = vld [vmem:[#allocation2 + $0x8] sm:$0xff]
      %380 = vrot.lane.b32.xlu0 %v374, 126
      %v381 = vpop.permute.xlu0 %380
      %382 = vrot.lane.b32.xlu0 %v377, 126
      %v383 = vpop.permute.xlu0 %382
      %vm384 = vcmask 1031168
      %v385 = vsel %vm384, %v381, %v383
      %vm387 = vcmask 64512
      %v389 = vsel %vm387, %v376, 0
      %391 = vmatprep.subr.mxu0 0.0
      %392 = vmatpush1.msra.mxu0 0.0
      %393 = vmatprep.subr.mxu0 0.0
      %394 = vmatpush1.msra.mxu0 0.0
      %395 = vmatprep.subr.mxu0 0.0
      %396 = vmatpush1.msra.mxu0 0.0
      %397 = vmatprep.subr.mxu0 0.0
      %398 = vmatpush1.msra.mxu0 0.0
      %399 = vmatprep.subr.mxu0 0.0
      %400 = vmatpush1.msra.mxu0 0.0
      %401 = vmatprep.subr.mxu0 0.0
      %402 = vmatpush1.msra.mxu0 0.0
      %403 = vmatprep.subr.mxu0 0.0
      %404 = vmatpush1.msra.mxu0 0.0
      %405 = vmatprep.subr.mxu0 0.0
      %406 = vmatpush1.msra.mxu0 0.0
      %407 = vmatprep.subr.mxu0 0.0
      %408 = vmatpush1.msra.mxu0 0.0
      %409 = vmatprep.subr.mxu0 0.0
      %410 = vmatpush1.msra.mxu0 0.0
      %411 = vmatprep.subr.mxu0 0.0
      %412 = vmatpush1.msra.mxu0 0.0
      %413 = vmatprep.subr.mxu0 0.0
      %414 = vmatpush1.msra.mxu0 0.0
      %415 = vmatprep.subr.mxu0 0.0
      %416 = vmatpush1.msra.mxu0 0.0
      %417 = vmatprep.subr.mxu0 0.0
      %418 = vmatpush1.msra.mxu0 0.0
      %419 = vmatprep.subr.mxu0 0.0
      %420 = vmatpush1.msra.mxu0 0.0
      %421 = vmatprep.subr.mxu0 0.0
      %422 = vmatpush1.msra.mxu0 %v385
      %423 = vmatprep.subr.mxu0 0.0
      %424 = vmatpush2.msra.mxu0 0.0
      %425 = vmatprep.subr.mxu0 0.0
      %426 = vmatpush2.msra.mxu0 0.0
      %427 = vmatprep.subr.mxu0 0.0
      %428 = vmatpush2.msra.mxu0 0.0
      %429 = vmatprep.subr.mxu0 0.0
      %430 = vmatpush2.msra.mxu0 0.0
      %431 = vmatprep.subr.mxu0 0.0
      %432 = vmatpush2.msra.mxu0 0.0
      %433 = vmatprep.subr.mxu0 0.0
      %434 = vmatpush2.msra.mxu0 0.0
      %435 = vmatprep.subr.mxu0 0.0
      %436 = vmatpush2.msra.mxu0 0.0
      %437 = vmatprep.subr.mxu0 0.0
      %438 = vmatpush2.msra.mxu0 0.0
      %439 = vmatprep.subr.mxu0 0.0
      %440 = vmatpush2.msra.mxu0 0.0
      %441 = vmatprep.subr.mxu0 0.0
      %442 = vmatpush2.msra.mxu0 0.0
      %443 = vmatprep.subr.mxu0 0.0
      %444 = vmatpush2.msra.mxu0 0.0
      %445 = vmatprep.subr.mxu0 0.0
      %446 = vmatpush2.msra.mxu0 0.0
      %447 = vmatprep.subr.mxu0 0.0
      %448 = vmatpush2.msra.mxu0 0.0
      %449 = vmatprep.subr.mxu0 0.0
      %450 = vmatpush2.msra.mxu0 0.0
      %451 = vmatprep.subr.mxu0 0.0
      %452 = vmatpush2.msra.mxu0 0.0
      %453 = vmatprep.subr.mxu0 0.0
      %454 = vmatpush2.msra.mxu0 0.0
      %455 = vmatprep.mubr.f32.mxu0 0.0
      %456 = vmatmul.mubr.f32.gmra.mxu0 %v389
      %v457 = vpop.f32.mrf.mxu0
      %v458 = vadd.f32 0.0, %v457
      %v459 = vpop.f32.mrf.mxu0
      %460 = vdwg.mxu0
      %v462 = vsel %vm387, %v373, 0
      %464 = vmatprep.subr.mxu0 0.0
      %465 = vmatpush1.msra.mxu0 0.0
      %466 = vmatprep.subr.mxu0 0.0
      %467 = vmatpush1.msra.mxu0 0.0
      %468 = vmatprep.subr.mxu0 0.0
      %469 = vmatpush1.msra.mxu0 0.0
      %470 = vmatprep.subr.mxu0 0.0
      %471 = vmatpush1.msra.mxu0 0.0
      %472 = vmatprep.subr.mxu0 0.0
      %473 = vmatpush1.msra.mxu0 0.0
      %474 = vmatprep.subr.mxu0 0.0
      %475 = vmatpush1.msra.mxu0 0.0
      %476 = vmatprep.subr.mxu0 0.0
      %477 = vmatpush1.msra.mxu0 0.0
      %478 = vmatprep.subr.mxu0 0.0
      %479 = vmatpush1.msra.mxu0 0.0
      %480 = vmatprep.subr.mxu0 0.0
      %481 = vmatpush1.msra.mxu0 0.0
      %482 = vmatprep.subr.mxu0 0.0
      %483 = vmatpush1.msra.mxu0 0.0
      %484 = vmatprep.subr.mxu0 0.0
      %485 = vmatpush1.msra.mxu0 0.0
      %486 = vmatprep.subr.mxu0 0.0
      %487 = vmatpush1.msra.mxu0 0.0
      %488 = vmatprep.subr.mxu0 0.0
      %489 = vmatpush1.msra.mxu0 0.0
      %490 = vmatprep.subr.mxu0 0.0
      %491 = vmatpush1.msra.mxu0 0.0
      %492 = vmatprep.subr.mxu0 0.0
      %493 = vmatpush1.msra.mxu0 0.0
      %494 = vmatprep.subr.mxu0 0.0
      %495 = vmatpush1.msra.mxu0 %v374
      %496 = vmatprep.subr.mxu0 0.0
      %497 = vmatpush2.msra.mxu0 0.0
      %498 = vmatprep.subr.mxu0 0.0
      %499 = vmatpush2.msra.mxu0 0.0
      %500 = vmatprep.subr.mxu0 0.0
      %501 = vmatpush2.msra.mxu0 0.0
      %502 = vmatprep.subr.mxu0 0.0
      %503 = vmatpush2.msra.mxu0 0.0
      %504 = vmatprep.subr.mxu0 0.0
      %505 = vmatpush2.msra.mxu0 0.0
      %506 = vmatprep.subr.mxu0 0.0
      %507 = vmatpush2.msra.mxu0 0.0
      %508 = vmatprep.subr.mxu0 0.0
      %509 = vmatpush2.msra.mxu0 0.0
      %510 = vmatprep.subr.mxu0 0.0
      %511 = vmatpush2.msra.mxu0 0.0
      %512 = vmatprep.subr.mxu0 0.0
      %513 = vmatpush2.msra.mxu0 0.0
      %514 = vmatprep.subr.mxu0 0.0
      %515 = vmatpush2.msra.mxu0 0.0
      %516 = vmatprep.subr.mxu0 0.0
      %517 = vmatpush2.msra.mxu0 0.0
      %518 = vmatprep.subr.mxu0 0.0
      %519 = vmatpush2.msra.mxu0 0.0
      %520 = vmatprep.subr.mxu0 0.0
      %521 = vmatpush2.msra.mxu0 0.0
      %522 = vmatprep.subr.mxu0 0.0
      %523 = vmatpush2.msra.mxu0 0.0
      %524 = vmatprep.subr.mxu0 0.0
      %525 = vmatpush2.msra.mxu0 0.0
      %526 = vmatprep.subr.mxu0 0.0
      %527 = vmatpush2.msra.mxu0 0.0
      %528 = vmatprep.mubr.f32.mxu0 0.0
      %529 = vmatmul.mubr.f32.gmra.mxu0 %v462
      %v530 = vpop.f32.mrf.mxu0
      %v531 = vadd.f32 %v458, %v530
      %v532 = vpop.f32.mrf.mxu0
      %533 = vdwg.mxu0
      %s534 = scalar_lea.vmem %s2, 16
      %v535 = vld [vmem:[%s534] sm:$0xff]
      %v537 = vsel %vm387, %v535, 0
      %539 = vmatprep.subr.mxu0 0.0
      %540 = vmatpush1.msra.mxu0 0.0
      %541 = vmatprep.subr.mxu0 0.0
      %542 = vmatpush1.msra.mxu0 0.0
      %543 = vmatprep.subr.mxu0 0.0
      %544 = vmatpush1.msra.mxu0 0.0
      %545 = vmatprep.subr.mxu0 0.0
      %546 = vmatpush1.msra.mxu0 0.0
      %547 = vmatprep.subr.mxu0 0.0
      %548 = vmatpush1.msra.mxu0 0.0
      %549 = vmatprep.subr.mxu0 0.0
      %550 = vmatpush1.msra.mxu0 0.0
      %551 = vmatprep.subr.mxu0 0.0
      %552 = vmatpush1.msra.mxu0 0.0
      %553 = vmatprep.subr.mxu0 0.0
      %554 = vmatpush1.msra.mxu0 0.0
      %555 = vmatprep.subr.mxu0 0.0
      %556 = vmatpush1.msra.mxu0 0.0
      %557 = vmatprep.subr.mxu0 0.0
      %558 = vmatpush1.msra.mxu0 0.0
      %559 = vmatprep.subr.mxu0 0.0
      %560 = vmatpush1.msra.mxu0 0.0
      %561 = vmatprep.subr.mxu0 0.0
      %562 = vmatpush1.msra.mxu0 0.0
      %563 = vmatprep.subr.mxu0 0.0
      %564 = vmatpush1.msra.mxu0 0.0
      %565 = vmatprep.subr.mxu0 0.0
      %566 = vmatpush1.msra.mxu0 0.0
      %567 = vmatprep.subr.mxu0 0.0
      %568 = vmatpush1.msra.mxu0 0.0
      %569 = vmatprep.subr.mxu0 0.0
      %570 = vmatpush1.msra.mxu0 %v362
      %571 = vmatprep.subr.mxu0 0.0
      %572 = vmatpush2.msra.mxu0 0.0
      %573 = vmatprep.subr.mxu0 0.0
      %574 = vmatpush2.msra.mxu0 0.0
      %575 = vmatprep.subr.mxu0 0.0
      %576 = vmatpush2.msra.mxu0 0.0
      %577 = vmatprep.subr.mxu0 0.0
      %578 = vmatpush2.msra.mxu0 0.0
      %579 = vmatprep.subr.mxu0 0.0
      %580 = vmatpush2.msra.mxu0 0.0
      %581 = vmatprep.subr.mxu0 0.0
      %582 = vmatpush2.msra.mxu0 0.0
      %583 = vmatprep.subr.mxu0 0.0
      %584 = vmatpush2.msra.mxu0 0.0
      %585 = vmatprep.subr.mxu0 0.0
      %586 = vmatpush2.msra.mxu0 0.0
      %587 = vmatprep.subr.mxu0 0.0
      %588 = vmatpush2.msra.mxu0 0.0
      %589 = vmatprep.subr.mxu0 0.0
      %590 = vmatpush2.msra.mxu0 0.0
      %591 = vmatprep.subr.mxu0 0.0
      %592 = vmatpush2.msra.mxu0 0.0
      %593 = vmatprep.subr.mxu0 0.0
      %594 = vmatpush2.msra.mxu0 0.0
      %595 = vmatprep.subr.mxu0 0.0
      %596 = vmatpush2.msra.mxu0 0.0
      %597 = vmatprep.subr.mxu0 0.0
      %598 = vmatpush2.msra.mxu0 0.0
      %599 = vmatprep.subr.mxu0 0.0
      %600 = vmatpush2.msra.mxu0 0.0
      %601 = vmatprep.subr.mxu0 0.0
      %602 = vmatpush2.msra.mxu0 0.0
      %603 = vmatprep.mubr.f32.mxu0 0.0
      %604 = vmatmul.mubr.f32.gmra.mxu0 %v537
      %v605 = vpop.f32.mrf.mxu0
      %v606 = vadd.f32 0.0, %v605
      %v607 = vpop.f32.mrf.mxu0
      %608 = vdwg.mxu0
      %v609 = vadd.f32 %v531, %v606
      %v610 = vld [vmem:[%s3] sm:$0xff]
      %612 = vset.pattern.permute.xlu0 0
      %613 = vperm.xlu0 %612, %v610
      %v614 = vpop.permute.xlu0 %613
      %v616 = vadd.f32 %v609, %v614
      %v617 = vmax.f32 %v616, 0.0
      %v618 = vld [vmem:[%s4] sm:$0xff]
      %v619 = vld [vmem:[%s5] sm:$0xff]
      %621 = vset.pattern.permute.xlu0 0
      %622 = vperm.xlu0 %621, %v619
      %v623 = vpop.permute.xlu0 %622
      %v626 = vsel %vm387, %v618, 0
      %628 = vmatprep.subr.mxu0 0.0
      %629 = vmatpush1.msra.mxu0 0.0
      %630 = vmatprep.subr.mxu0 0.0
      %631 = vmatpush1.msra.mxu0 0.0
      %632 = vmatprep.subr.mxu0 0.0
      %633 = vmatpush1.msra.mxu0 0.0
      %634 = vmatprep.subr.mxu0 0.0
      %635 = vmatpush1.msra.mxu0 0.0
      %636 = vmatprep.subr.mxu0 0.0
      %637 = vmatpush1.msra.mxu0 0.0
      %638 = vmatprep.subr.mxu0 0.0
      %639 = vmatpush1.msra.mxu0 0.0
      %640 = vmatprep.subr.mxu0 0.0
      %641 = vmatpush1.msra.mxu0 0.0
      %642 = vmatprep.subr.mxu0 0.0
      %643 = vmatpush1.msra.mxu0 0.0
      %644 = vmatprep.subr.mxu0 0.0
      %645 = vmatpush1.msra.mxu0 0.0
      %646 = vmatprep.subr.mxu0 0.0
      %647 = vmatpush1.msra.mxu0 0.0
      %648 = vmatprep.subr.mxu0 0.0
      %649 = vmatpush1.msra.mxu0 0.0
      %650 = vmatprep.subr.mxu0 0.0
      %651 = vmatpush1.msra.mxu0 0.0
      %652 = vmatprep.subr.mxu0 0.0
      %653 = vmatpush1.msra.mxu0 0.0
      %654 = vmatprep.subr.mxu0 0.0
      %655 = vmatpush1.msra.mxu0 0.0
      %656 = vmatprep.subr.mxu0 0.0
      %657 = vmatpush1.msra.mxu0 0.0
      %658 = vmatprep.subr.mxu0 0.0
      %659 = vmatpush1.msra.mxu0 %v617
      %660 = vmatprep.subr.mxu0 0.0
      %661 = vmatpush2.msra.mxu0 0.0
      %662 = vmatprep.subr.mxu0 0.0
      %663 = vmatpush2.msra.mxu0 0.0
      %664 = vmatprep.subr.mxu0 0.0
      %665 = vmatpush2.msra.mxu0 0.0
      %666 = vmatprep.subr.mxu0 0.0
      %667 = vmatpush2.msra.mxu0 0.0
      %668 = vmatprep.subr.mxu0 0.0
      %669 = vmatpush2.msra.mxu0 0.0
      %670 = vmatprep.subr.mxu0 0.0
      %671 = vmatpush2.msra.mxu0 0.0
      %672 = vmatprep.subr.mxu0 0.0
      %673 = vmatpush2.msra.mxu0 0.0
      %674 = vmatprep.subr.mxu0 0.0
      %675 = vmatpush2.msra.mxu0 0.0
      %676 = vmatprep.subr.mxu0 0.0
      %677 = vmatpush2.msra.mxu0 0.0
      %678 = vmatprep.subr.mxu0 0.0
      %679 = vmatpush2.msra.mxu0 0.0
      %680 = vmatprep.subr.mxu0 0.0
      %681 = vmatpush2.msra.mxu0 0.0
      %682 = vmatprep.subr.mxu0 0.0
      %683 = vmatpush2.msra.mxu0 0.0
      %684 = vmatprep.subr.mxu0 0.0
      %685 = vmatpush2.msra.mxu0 0.0
      %686 = vmatprep.subr.mxu0 0.0
      %687 = vmatpush2.msra.mxu0 0.0
      %688 = vmatprep.subr.mxu0 0.0
      %689 = vmatpush2.msra.mxu0 0.0
      %690 = vmatprep.subr.mxu0 0.0
      %691 = vmatpush2.msra.mxu0 0.0
      %692 = vmatprep.mubr.f32.mxu0 0.0
      %693 = vmatmul.mubr.f32.gmra.mxu0 %v626
      %v694 = vpop.f32.mrf.mxu0
      %v695 = vadd.f32 %v623, %v694
      %v696 = vpop.f32.mrf.mxu0
      %697 = vdwg.mxu0
      %698 = vadd.xlane.f32.xlu0 %v695
      %v699 = vpop.xlane.xlu0 %698
      %vm700 = vcmask 7168
      %701 = vst.msk [vmem:[%s353] sm:$0xff] %vm700, %v699
      %v702 = vmul.f32 %v695, %v695
      %703 = vadd.xlane.f32.xlu0 %v702
      %v704 = vpop.xlane.xlu0 %703
      %705 = vst.msk [vmem:[%s361] sm:$0xff] %vm700, %v704
      %p706 = scmp.lt.s32.totalorder %s23, 1
      %s707 = scalar_select %p706, %s23, 1
      %p708 = scmp.lt.s32.totalorder %s24, 1
      %s709 = scalar_select %p708, %s24, 1
      %s710 = smul.addr %s707, 2
      %s711 = sadd.s32 %s709, %s710
      %s712 = smul.addr %s711, 8
      %s713 = scalar_lea.vmem %s6, %s712
      %p714 = scmp.lt.s32.totalorder %s23, 1
      %s715 = scalar_select %p714, %s23, 1
      %p716 = scmp.lt.s32.totalorder %s24, 1
      %s717 = scalar_select %p716, %s24, 1
      %s718 = smul.addr %s715, 2
      %s719 = sadd.s32 %s717, %s718
      %s720 = smul.addr %s719, 8
      %s721 = scalar_lea.vmem %s7, %s720
      // Predicated region
      $region45: #{tpu_custom_call.1} parent=43 // pred_check
        %p722 = pneg %p191
      $region46: #{tpu_custom_call.1} parent=43 // pred_check_branch
        %724 = sbr.rel (%p722) target = $region48
      $region47: #{tpu_custom_call.1} parent=43 // pred_region
        _
      $region48: #{tpu_custom_call.1} parent=43 // pred_fallthru
        _
      // Predicated region
      $region49: #{tpu_custom_call.1} parent=43 // pred_check
        %p725 = pneg %p219
      $region50: #{tpu_custom_call.1} parent=43 // pred_check_branch
        %727 = sbr.rel (%p725) target = $region52
      $region51: #{tpu_custom_call.1} parent=43 // pred_region
        _
      $region52: #{tpu_custom_call.1} parent=43 // pred_fallthru
        _
    $region44: #{tpu_custom_call.1} parent=5 // pred_fallthru
      _
    %p728 = scmp.le.s32.totalorder 2, %s14
    // Predicated region
    $region53: #{tpu_custom_call.1} parent=5 // pred_check
      %p729 = pneg %p728
    $region54: #{tpu_custom_call.1} parent=5 // pred_check_branch
      %731 = sbr.rel (%p729) target = $region56
    $region55: #{tpu_custom_call.1} parent=5 // pred_region
      %s732 = ssub.s32 %s14, 2
      // Predicated region
      $region57: #{tpu_custom_call.1} parent=55 // pred_check
        %p733 = pneg %p197
      $region58: #{tpu_custom_call.1} parent=55 // pred_check_branch
        %735 = sbr.rel (%p733) target = $region60
      $region59: #{tpu_custom_call.1} parent=55 // pred_region
        %p736 = scmp.lt.s32.totalorder %s25, 1
        %s737 = scalar_select %p736, %s25, 1
        %p738 = scmp.lt.s32.totalorder %s26, 1
        %s739 = scalar_select %p738, %s26, 1
        %s740 = smul.addr %s737, 2
        %s741 = sadd.s32 %s739, %s740
        %s742 = smul.addr %s741, 8
        %s743 = scalar_lea.vmem %s6, %s742
      $region60: #{tpu_custom_call.1} parent=55 // pred_fallthru
        _
      // Predicated region
      $region61: #{tpu_custom_call.1} parent=55 // pred_check
        %p744 = pneg %p225
      $region62: #{tpu_custom_call.1} parent=55 // pred_check_branch
        %746 = sbr.rel (%p744) target = $region64
      $region63: #{tpu_custom_call.1} parent=55 // pred_region
        %p747 = scmp.lt.s32.totalorder %s25, 1
        %s748 = scalar_select %p747, %s25, 1
        %p749 = scmp.lt.s32.totalorder %s26, 1
        %s750 = scalar_select %p749, %s26, 1
        %s751 = smul.addr %s748, 2
        %s752 = sadd.s32 %s750, %s751
        %s753 = smul.addr %s752, 8
        %s754 = scalar_lea.vmem %s7, %s753
      $region64: #{tpu_custom_call.1} parent=55 // pred_fallthru
        _
    $region56: #{tpu_custom_call.1} parent=5 // pred_fallthru
      _
  $region6: #{tpu_custom_call.1} parent=0 // loop_footer
    %s18 = sadd.s32 1, %s14
  $region7: #{tpu_custom_call.1} parent=0 // loop_footer_branch
    %13 = sbr.rel target = $region3
  $region8: #{tpu_custom_call.1} parent=0 // loop_exit
    _

</llo_original>
